<compile_context>
chip_gen: v5e
topology: v5e:2x2
jax: 0.10.0
libtpu: 0.0.40
codegen_flags: <defaults>
</compile_context>

<pallas_src>
import functools

import jax
import jax.numpy as jnp
import numpy as np
from jax import lax
from jax.experimental import pallas as pl
from jax.experimental.pallas import tpu as pltpu


# ---------------------------------------------------------------------------
# host-side (numpy) constant builders
# ---------------------------------------------------------------------------
def _bilinear_matrix(dst, src):
    """(dst, src) interpolation matrix, bilinear with align_corners=True
    (the semantics of nn.UpsamplingBilinear2d)."""
    A = np.zeros((dst, src), dtype=np.float32)
    if dst == 1 or src == 1:
        A[:, 0] = 1.0
        return A
    scale = (src - 1) / (dst - 1)
    for i in range(dst):
        pos = i * scale
        i0 = min(int(np.floor(pos)), src - 1)
        i1 = min(i0 + 1, src - 1)
        frac = np.float32(pos - i0)
        A[i, i0] += 1.0 - frac
        A[i, i1] += frac
    return A


def _width_tap_selector(W):
    """T[dw, p, w_out] = 1 iff p == w_out + dw - 1 (width SAME padding folds in
    by simply dropping out-of-range taps)."""
    T = np.zeros((3, W, W), dtype=np.float32)
    for dw in range(3):
        for w_out in range(W):
            p = w_out + dw - 1
            if 0 <= p < W:
                T[dw, p, w_out] = 1.0
    return T


# ---------------------------------------------------------------------------
# fused Pallas kernel: conv3x3 (SAME) + bilinear upsample + sigmoid
# ---------------------------------------------------------------------------
def _head_kernel(x_ref, b_ref, bias_ref, bw_ref, ah_ref, o_ref, *, Nb, H, WCin):
    """Processes a block of Nb images.  x_ref rows are pre-padded (H+2)."""
    md = b_ref.dtype                       # MXU operand dtype (f32 or bf16)
    rows = Nb * H

    # ---- conv3x3: 3 accumulating matmuls against per-dh banded blocks ----
    # LHS_dh is a static row-window of the padded block; all Nb images share
    # the matmul M dimension.  No scratch, no zero fill, no shifted copies.
    acc = jnp.dot(x_ref[:, 0:H, :].reshape(rows, WCin), b_ref[0],
                  preferred_element_type=jnp.float32)
    for dh in (1, 2):
        acc += jnp.dot(x_ref[:, dh:dh + H, :].reshape(rows, WCin), b_ref[dh],
                       preferred_element_type=jnp.float32)
    conv = acc + bias_ref[...]                                 # (Nb*H, W*Cout) f32

    # ---- width upsample FIRST (W*Cout > H => fewer FLOPs, wide lane dim) ----
    up_w = jnp.dot(conv.astype(md), bw_ref[...],
                   preferred_element_type=jnp.float32)         # (Nb*H, Ws*Cout)

    # ---- height upsample (per image) + sigmoid, lane-dense stores ----
    ah = ah_ref[...]                                           # (Hs, H)
    for b in range(Nb):
        up = jnp.dot(ah, up_w[b * H:(b + 1) * H, :].astype(md),
                     preferred_element_type=jnp.float32)       # (Hs, Ws*Cout)
        o_ref[b] = jax.nn.sigmoid(up).astype(o_ref.dtype)


def head_for_supervision_forward(x_nchw, weight, bias, size, *,
                                 compute_dtype=jnp.float32,
                                 images_per_step=None):
    """Pallas equivalent of HeadForSupervision.forward (NCHW in / NCHW out)."""
    Hs, Ws = size
    N, Cin, H, W = x_nchw.shape
    Cout = weight.shape[0]
    WCin, WCout, WsCout = W * Cin, W * Cout, Ws * Cout

    # ---- images per grid step: fill the MXU M dimension (>=128/256 rows) ----
    if images_per_step is None:
        target_rows = 256                      # v6e/v7x MXU pass; >=128 on v5e
        Nb = 1
        for d in range(1, N + 1):
            if N % d == 0 and d * H <= max(target_rows, H):
                Nb = d
    else:
        Nb = images_per_step
    assert N % Nb == 0, "images_per_step must divide the batch"

    # ---- layout glue: NCHW -> (N, H+2, W*Cin) lane-dense, row-padded ----
    x_rows = jnp.transpose(x_nchw, (0, 2, 3, 1)).reshape(N, H, WCin)
    x_pad = jnp.pad(x_rows, ((0, 0), (1, 1), (0, 0))).astype(compute_dtype)

    # ---- host-built constants (numpy selector + ONE einsum over the weights) ----
    T = _width_tap_selector(W)                                  # (3, W, W) numpy
    # B[dh, p*Cin+ci, w*Cout+co] = sum_dw T[dw,p,w] * weight[co,ci,dh,dw]
    bconv = jnp.einsum('dpw,oihd->hpiwo', jnp.asarray(T), weight.astype(jnp.float32))
    bconv = bconv.reshape(3, WCin, WCout).astype(compute_dtype)
    bias_row = jnp.tile(bias.astype(jnp.float32), W).reshape(1, WCout)   # stays f32
    a_w = _bilinear_matrix(Ws, W)                                        # numpy
    bw = jnp.asarray(np.kron(a_w.T, np.eye(Cout, dtype=np.float32)),
                     dtype=compute_dtype)                                # (W*Cout, Ws*Cout)
    a_h = jnp.asarray(_bilinear_matrix(Hs, H), dtype=compute_dtype)      # (Hs, H)

    # ---- cost estimate (helps XLA schedule around the custom call) ----
    itemsize = int(jnp.dtype(compute_dtype).itemsize)
    flops = int(2 * N * H * (3 * WCin) * WCout          # banded conv
                + 2 * N * H * WCout * WsCout            # width upsample
                + 2 * N * Hs * H * WsCout)              # height upsample
    bytes_accessed = int((x_pad.size + bconv.size + bw.size + a_h.size) * itemsize
                         + bias_row.size * 4 + N * Hs * WsCout * 4)

    kernel = functools.partial(_head_kernel, Nb=Nb, H=H, WCin=WCin)
    out_flat = pl.pallas_call(
        kernel,
        out_shape=jax.ShapeDtypeStruct((N, Hs, WsCout), jnp.float32),
        grid=(N // Nb,),
        in_specs=[
            pl.BlockSpec((Nb, H + 2, WCin), lambda n: (n, 0, 0)),
            # constant operands: same block every step -> DMA'd once
            pl.BlockSpec((3, WCin, WCout), lambda n: (0, 0, 0)),
            pl.BlockSpec((1, WCout), lambda n: (0, 0)),
            pl.BlockSpec((WCout, WsCout), lambda n: (0, 0)),
            pl.BlockSpec((Hs, H), lambda n: (0, 0)),
        ],
        out_specs=pl.BlockSpec((Nb, Hs, WsCout), lambda n: (n, 0, 0)),
        compiler_params=pltpu.CompilerParams(dimension_semantics=("parallel",)),
        cost_estimate=pl.CostEstimate(flops=flops,
                                      transcendentals=int(N * Hs * WsCout),
                                      bytes_accessed=bytes_accessed),
    )(x_pad, bconv, bias_row, bw, a_h)

    # (N, Hs, Ws*Cout) -> NCHW (PyTorch contract); reshape is free, the single
    # transpose is the only remaining layout HBM pass (see TODO at top).
    return jnp.transpose(out_flat.reshape(N, Hs, Ws, Cout), (0, 3, 1, 2))


# ---------------------------------------------------------------------------
# independent reference (lax conv + gather-based bilinear + sigmoid)
# ---------------------------------------------------------------------------
def _reference(x_nchw, weight, bias, size):
    Hs, Ws = size
    N, C, H, W = x_nchw.shape
    conv = lax.conv_general_dilated(
        x_nchw, weight, window_strides=(1, 1), padding="SAME",
        dimension_numbers=("NCHW", "OIHW", "NCHW")) + bias[None, :, None, None]

    def coords(dst, src):
        if dst == 1 or src == 1:
            return np.zeros((dst,), dtype=np.float64)
        return np.arange(dst, dtype=np.float64) * (src - 1) / (dst - 1)

    hc, wcs = coords(Hs, H), coords(Ws, W)
    h0 = np.minimum(np.floor(hc).astype(np.int32), H - 1)
    h1 = np.minimum(h0 + 1, H - 1)
    ha = (hc - h0).astype(np.float32)
    w0 = np.minimum(np.floor(wcs).astype(np.int32), W - 1)
    w1 = np.minimum(w0 + 1, W - 1)
    wa = (wcs - w0).astype(np.float32)

    top = (conv[:, :, h0, :] * (1.0 - ha)[None, None, :, None]
           + conv[:, :, h1, :] * ha[None, None, :, None])
    up = top[:, :, :, w0] * (1.0 - wa) + top[:, :, :, w1] * wa
    return jax.nn.sigmoid(up)


if __name__ == "__main__":
    N, C_IN, H, W = 2, 4, 16, 16
    C_OUT = 8
    SIZE = (32, 32)

    key = jax.random.PRNGKey(0)
    kx, kw, kb = jax.random.split(key, 3)
    x = jax.random.normal(kx, (N, C_IN, H, W), dtype=jnp.float32)
    weight = 0.1 * jax.random.normal(kw, (C_OUT, C_IN, 3, 3), dtype=jnp.float32)
    bias = 0.1 * jax.random.normal(kb, (C_OUT,), dtype=jnp.float32)

    ref = _reference(x, weight, bias, SIZE)

    # f32 MXU path (tight tolerance)
    out = jax.block_until_ready(head_for_supervision_forward(x, weight, bias, SIZE))
    assert out.shape == (N, C_OUT, SIZE[0], SIZE[1])
    np.testing.assert_allclose(np.asarray(out), np.asarray(ref), rtol=1e-4, atol=1e-5)

    # bf16 MXU-operand path (v6e/v7x throughput / VMEM win), f32 accumulation
    out_bf16 = jax.block_until_ready(
        head_for_supervision_forward(x, weight, bias, SIZE,
                                     compute_dtype=jnp.bfloat16))
    np.testing.assert_allclose(np.asarray(out_bf16), np.asarray(ref),
                               rtol=2e-2, atol=2e-2)

    print("KERNEL_OK")
</pallas_src>

<mosaic_0001>
module attributes {stable_mosaic.version = 11 : i64} {
  func.func @_head_kernel(%arg0: i32, %arg1: memref<2x18x64xf32, #tpu.memory_space<vmem>>, %arg2: memref<3x64x128xf32, #tpu.memory_space<vmem>>, %arg3: memref<1x128xf32, #tpu.memory_space<vmem>>, %arg4: memref<128x256xf32, #tpu.memory_space<vmem>>, %arg5: memref<32x16xf32, #tpu.memory_space<vmem>>, %arg6: memref<2x32x256xf32, #tpu.memory_space<vmem>>) attributes {dimension_semantics = [#tpu.dimension_semantics<parallel>], iteration_bounds = array<i64: 1>, scalar_prefetch = 0 : i64, scratch_operands = 0 : i64, tpu.core_type = #tpu.core_type<tc>, window_params = [{transform_indices = @transform_0, window_bounds = array<i64: 2, 18, 64>}, {pipeline_mode = #tpu.pipeline_mode<synchronous>, transform_indices = @transform_1, window_bounds = array<i64: 3, 64, 128>}, {pipeline_mode = #tpu.pipeline_mode<synchronous>, transform_indices = @transform_2, window_bounds = array<i64: 1, 128>}, {pipeline_mode = #tpu.pipeline_mode<synchronous>, transform_indices = @transform_3, window_bounds = array<i64: 128, 256>}, {pipeline_mode = #tpu.pipeline_mode<synchronous>, transform_indices = @transform_4, window_bounds = array<i64: 32, 16>}, {transform_indices = @transform_5, window_bounds = array<i64: 2, 32, 256>}]} {
    %c0 = arith.constant 0 : index
    %c0_0 = arith.constant 0 : index
    %c0_1 = arith.constant 0 : index
    %0 = vector.load %arg1[%c0, %c0_0, %c0_1] : memref<2x18x64xf32, #tpu.memory_space<vmem>>, vector<2x16x64xf32>
    %1 = vector.shape_cast %0 : vector<2x16x64xf32> to vector<32x64xf32>
    %c0_2 = arith.constant 0 : index
    %c0_3 = arith.constant 0 : index
    %c0_4 = arith.constant 0 : index
    %2 = vector.load %arg2[%c0_2, %c0_3, %c0_4] : memref<3x64x128xf32, #tpu.memory_space<vmem>>, vector<1x64x128xf32>
    %3 = vector.shape_cast %2 : vector<1x64x128xf32> to vector<64x128xf32>
    %cst = arith.constant dense<0.000000e+00> : vector<32x128xf32>
    %4 = tpu.matmul %1, %3, %cst {dimension_numbers = #tpu.dot_dimension_numbers<[1], [0], [0], [1], [0, 0, 1, 1], [], []>} : vector<32x64xf32>, vector<64x128xf32>, vector<32x128xf32> -> vector<32x128xf32>
    %c0_5 = arith.constant 0 : index
    %c1 = arith.constant 1 : index
    %c0_6 = arith.constant 0 : index
    %5 = vector.load %arg1[%c0_5, %c1, %c0_6] : memref<2x18x64xf32, #tpu.memory_space<vmem>>, vector<2x16x64xf32>
    %6 = vector.shape_cast %5 : vector<2x16x64xf32> to vector<32x64xf32>
    %c1_7 = arith.constant 1 : index
    %c0_8 = arith.constant 0 : index
    %c0_9 = arith.constant 0 : index
    %7 = vector.load %arg2[%c1_7, %c0_8, %c0_9] : memref<3x64x128xf32, #tpu.memory_space<vmem>>, vector<1x64x128xf32>
    %8 = vector.shape_cast %7 : vector<1x64x128xf32> to vector<64x128xf32>
    %cst_10 = arith.constant dense<0.000000e+00> : vector<32x128xf32>
    %9 = tpu.matmul %6, %8, %cst_10 {dimension_numbers = #tpu.dot_dimension_numbers<[1], [0], [0], [1], [0, 0, 1, 1], [], []>} : vector<32x64xf32>, vector<64x128xf32>, vector<32x128xf32> -> vector<32x128xf32>
    %10 = arith.addf %4, %9 : vector<32x128xf32>
    %c0_11 = arith.constant 0 : index
    %c2 = arith.constant 2 : index
    %c0_12 = arith.constant 0 : index
    %11 = vector.load %arg1[%c0_11, %c2, %c0_12] : memref<2x18x64xf32, #tpu.memory_space<vmem>>, vector<2x16x64xf32>
    %12 = vector.shape_cast %11 : vector<2x16x64xf32> to vector<32x64xf32>
    %c2_13 = arith.constant 2 : index
    %c0_14 = arith.constant 0 : index
    %c0_15 = arith.constant 0 : index
    %13 = vector.load %arg2[%c2_13, %c0_14, %c0_15] : memref<3x64x128xf32, #tpu.memory_space<vmem>>, vector<1x64x128xf32>
    %14 = vector.shape_cast %13 : vector<1x64x128xf32> to vector<64x128xf32>
    %cst_16 = arith.constant dense<0.000000e+00> : vector<32x128xf32>
    %15 = tpu.matmul %12, %14, %cst_16 {dimension_numbers = #tpu.dot_dimension_numbers<[1], [0], [0], [1], [0, 0, 1, 1], [], []>} : vector<32x64xf32>, vector<64x128xf32>, vector<32x128xf32> -> vector<32x128xf32>
    %16 = arith.addf %10, %15 : vector<32x128xf32>
    %c0_17 = arith.constant 0 : index
    %c0_18 = arith.constant 0 : index
    %17 = vector.load %arg3[%c0_17, %c0_18] : memref<1x128xf32, #tpu.memory_space<vmem>>, vector<1x128xf32>
    %18 = vector.broadcast %17 : vector<1x128xf32> to vector<32x128xf32>
    %19 = arith.addf %16, %18 : vector<32x128xf32>
    %c0_19 = arith.constant 0 : index
    %c0_20 = arith.constant 0 : index
    %20 = vector.load %arg4[%c0_19, %c0_20] : memref<128x256xf32, #tpu.memory_space<vmem>>, vector<128x256xf32>
    %cst_21 = arith.constant dense<0.000000e+00> : vector<32x256xf32>
    %21 = tpu.matmul %19, %20, %cst_21 {dimension_numbers = #tpu.dot_dimension_numbers<[1], [0], [0], [1], [0, 0, 1, 1], [], []>} : vector<32x128xf32>, vector<128x256xf32>, vector<32x256xf32> -> vector<32x256xf32>
    %c0_22 = arith.constant 0 : index
    %c0_23 = arith.constant 0 : index
    %22 = vector.load %arg5[%c0_22, %c0_23] : memref<32x16xf32, #tpu.memory_space<vmem>>, vector<32x16xf32>
    %23 = vector.extract_strided_slice %21 {offsets = [0, 0], sizes = [16, 256], strides = [1, 1]} : vector<32x256xf32> to vector<16x256xf32>
    %cst_24 = arith.constant dense<0.000000e+00> : vector<32x256xf32>
    %24 = tpu.matmul %22, %23, %cst_24 {dimension_numbers = #tpu.dot_dimension_numbers<[1], [0], [0], [1], [0, 0, 1, 1], [], []>} : vector<32x16xf32>, vector<16x256xf32>, vector<32x256xf32> -> vector<32x256xf32>
    %25 = arith.negf %24 : vector<32x256xf32>
    %26 = math.exp %25 : vector<32x256xf32>
    %cst_25 = arith.constant 1.000000e+00 : f32
    %27 = vector.broadcast %cst_25 : f32 to vector<32x256xf32>
    %28 = arith.addf %27, %26 : vector<32x256xf32>
    %29 = arith.divf %27, %28 : vector<32x256xf32>
    %c0_26 = arith.constant 0 : index
    %c0_27 = arith.constant 0 : index
    %c0_28 = arith.constant 0 : index
    %30 = vector.load %arg6[%c0_26, %c0_27, %c0_28] : memref<2x32x256xf32, #tpu.memory_space<vmem>>, vector<1x32x256xf32>
    %31 = vector.shape_cast %30 : vector<1x32x256xf32> to vector<32x256xf32>
    %32 = vector.shape_cast %29 : vector<32x256xf32> to vector<1x32x256xf32>
    tpu.vector_store %arg6[%c0_26, %c0_27, %c0_28], %32 {strides = array<i32>} : memref<2x32x256xf32, #tpu.memory_space<vmem>>, vector<1x32x256xf32>,
    %33 = vector.extract_strided_slice %21 {offsets = [16, 0], sizes = [16, 256], strides = [1, 1]} : vector<32x256xf32> to vector<16x256xf32>
    %cst_29 = arith.constant dense<0.000000e+00> : vector<32x256xf32>
    %34 = tpu.matmul %22, %33, %cst_29 {dimension_numbers = #tpu.dot_dimension_numbers<[1], [0], [0], [1], [0, 0, 1, 1], [], []>} : vector<32x16xf32>, vector<16x256xf32>, vector<32x256xf32> -> vector<32x256xf32>
    %35 = arith.negf %34 : vector<32x256xf32>
    %36 = math.exp %35 : vector<32x256xf32>
    %cst_30 = arith.constant 1.000000e+00 : f32
    %37 = vector.broadcast %cst_30 : f32 to vector<32x256xf32>
    %38 = arith.addf %37, %36 : vector<32x256xf32>
    %39 = arith.divf %37, %38 : vector<32x256xf32>
    %c1_31 = arith.constant 1 : index
    %c0_32 = arith.constant 0 : index
    %c0_33 = arith.constant 0 : index
    %40 = vector.load %arg6[%c1_31, %c0_32, %c0_33] : memref<2x32x256xf32, #tpu.memory_space<vmem>>, vector<1x32x256xf32>
    %41 = vector.shape_cast %40 : vector<1x32x256xf32> to vector<32x256xf32>
    %42 = vector.shape_cast %39 : vector<32x256xf32> to vector<1x32x256xf32>
    tpu.vector_store %arg6[%c1_31, %c0_32, %c0_33], %42 {strides = array<i32>} : memref<2x32x256xf32, #tpu.memory_space<vmem>>, vector<1x32x256xf32>,
    return
  }
  func.func @transform_0(%arg0: i32) -> (i32, i32, i32) {
    %c0_i32 = arith.constant 0 : i32
    %c0_i32_0 = arith.constant 0 : i32
    %c0_i32_1 = arith.constant 0 : i32
    return %arg0, %c0_i32, %c0_i32_0 : i32, i32, i32
  }
  func.func @transform_1(%arg0: i32) -> (i32, i32, i32) {
    %c0_i32 = arith.constant 0 : i32
    %c0_i32_0 = arith.constant 0 : i32
    %c0_i32_1 = arith.constant 0 : i32
    %c0_i32_2 = arith.constant 0 : i32
    return %c0_i32, %c0_i32_0, %c0_i32_1 : i32, i32, i32
  }
  func.func @transform_2(%arg0: i32) -> (i32, i32) {
    %c0_i32 = arith.constant 0 : i32
    %c0_i32_0 = arith.constant 0 : i32
    %c0_i32_1 = arith.constant 0 : i32
    return %c0_i32, %c0_i32_0 : i32, i32
  }
  func.func @transform_3(%arg0: i32) -> (i32, i32) {
    %c0_i32 = arith.constant 0 : i32
    %c0_i32_0 = arith.constant 0 : i32
    %c0_i32_1 = arith.constant 0 : i32
    return %c0_i32, %c0_i32_0 : i32, i32
  }
  func.func @transform_4(%arg0: i32) -> (i32, i32) {
    %c0_i32 = arith.constant 0 : i32
    %c0_i32_0 = arith.constant 0 : i32
    %c0_i32_1 = arith.constant 0 : i32
    return %c0_i32, %c0_i32_0 : i32, i32
  }
  func.func @transform_5(%arg0: i32) -> (i32, i32, i32) {
    %c0_i32 = arith.constant 0 : i32
    %c0_i32_0 = arith.constant 0 : i32
    %c0_i32_1 = arith.constant 0 : i32
    return %arg0, %c0_i32, %c0_i32_0 : i32, i32, i32
  }
}

</mosaic_0001>

<llo_original>
// kernel: tpu_custom_call.1
$region0: #{tpu_custom_call.1}
  #allocation0 [shape = 'u32[]', space=smem, size = 0x4, offset = 0x4, fixed_abs, tag = 'smem constant byte address 0x4 - core index']
  #allocation1 [shape = 'u32[72,128]{1,0:T(1,128)}', space=vmem, size = 0x9000, scoped, tag = 'internal scratch']
  %s0 = inlined_call_operand.vmem [shape: f32[2,18,64], index: 0, kind: input, shape index: {}]
  %s1 = inlined_call_operand.hbm [shape: f32[3,64,128], index: 1, kind: input, shape index: {}]
  %s2 = inlined_call_operand.vmem [shape: f32[1,128], index: 2, kind: input, shape index: {}]
  %s3 = inlined_call_operand.hbm [shape: f32[128,256], index: 3, kind: input, shape index: {}]
  %s4 = inlined_call_operand.vmem [shape: f32[32,16], index: 4, kind: input, shape index: {}]
  %s5 = inlined_call_operand.hbm [shape: f32[2,32,256], index: 5, kind: output, shape index: {}]
  %s6 = sld [smem:[#allocation0]]
  $region38: #{tpu_custom_call.1} parent=0
    _
  %s8 = ssub.s32 1, %s6
  %s9 = scalar_select 0, %s8, %s6
  $region1: #{tpu_custom_call.1} parent=0
    #allocation2 [shape = 'u8[98304]{0}', space=vmem, size = 0x18000, scoped, tag = 'input window, operand 1, single buffered']
    #allocation3 [shape = 's32[1]{0}', space=sflag, size = 0x4, scoped, tag = 'scoped memory for tpu_custom_call.1']
    #allocation4 [shape = 's32[1]{0}', space=sflag, size = 0x4, scoped, tag = 'scoped memory for tpu_custom_call.1']
    #allocation5 [shape = 'u8[131072]{0}', space=vmem, size = 0x20000, scoped, tag = 'input window, operand 3, single buffered']
    #allocation6 [shape = 's32[1]{0}', space=sflag, size = 0x4, scoped, tag = 'scoped memory for tpu_custom_call.1']
    #allocation7 [shape = 'u8[65536]{0}', space=vmem, size = 0x10000, scoped, tag = 'output window, operand 0, single buffered']
    %10 = vsyncpa [#allocation3], 0
    %11 = vsyncpa [#allocation6], 0
    %12 = vsyncpa [#allocation4], 0
    // Predicated region
    $region2: #{tpu_custom_call.1} parent=1 // pred_check
      _
    $region3: #{tpu_custom_call.1} parent=1 // pred_check_branch
      %14 = sbr.rel (0) target = $region5
    $region4: #{tpu_custom_call.1} parent=1 // pred_region
      _
    $region5: #{tpu_custom_call.1} parent=1 // pred_fallthru
      _
    // Predicated region
    $region6: #{tpu_custom_call.1} parent=1 // pred_check
      _
    $region7: #{tpu_custom_call.1} parent=1 // pred_check_branch
      %16 = sbr.rel (0) target = $region9
    $region8: #{tpu_custom_call.1} parent=1 // pred_region
      %18 = vsyncadd [#allocation3], 0
      %s19 = sshll.u32 %s1, 4
      %s20 = int_to_ptr.hbm [resolvable:$true] %s19
      %s21 = sshll.u32 [#allocation2], 4
      %s22 = int_to_ptr.vmem [resolvable:$true] %s21
      %27 = dma.hbm_to_vmem [thread:$0]  %s20, 3072, %s22, [#allocation3], 128, 128, 8
    $region9: #{tpu_custom_call.1} parent=1 // pred_fallthru
      _
    // Predicated region
    $region10: #{tpu_custom_call.1} parent=1 // pred_check
      _
    $region11: #{tpu_custom_call.1} parent=1 // pred_check_branch
      %29 = sbr.rel (0) target = $region13
    $region12: #{tpu_custom_call.1} parent=1 // pred_region
      _
    $region13: #{tpu_custom_call.1} parent=1 // pred_fallthru
      _
    // Predicated region
    $region14: #{tpu_custom_call.1} parent=1 // pred_check
      _
    $region15: #{tpu_custom_call.1} parent=1 // pred_check_branch
      %31 = sbr.rel (0) target = $region17
    $region16: #{tpu_custom_call.1} parent=1 // pred_region
      %33 = vsyncadd [#allocation6], 0
      %s34 = sshll.u32 %s3, 4
      %s35 = int_to_ptr.hbm [resolvable:$true] %s34
      %s36 = sshll.u32 [#allocation5], 4
      %s37 = int_to_ptr.vmem [resolvable:$true] %s36
      %42 = dma.hbm_to_vmem [thread:$0]  %s35, 4096, %s37, [#allocation6], 256, 256, 16
    $region17: #{tpu_custom_call.1} parent=1 // pred_fallthru
      _
    // Predicated region
    $region18: #{tpu_custom_call.1} parent=1 // pred_check
      _
    $region19: #{tpu_custom_call.1} parent=1 // pred_check_branch
      %44 = sbr.rel (0) target = $region21
    $region20: #{tpu_custom_call.1} parent=1 // pred_region
      _
    $region21: #{tpu_custom_call.1} parent=1 // pred_fallthru
      _
    // Predicated region
    $region22: #{tpu_custom_call.1} parent=1 // pred_check
      _
    $region23: #{tpu_custom_call.1} parent=1 // pred_check_branch
      %46 = sbr.rel (0) target = $region25
    $region24: #{tpu_custom_call.1} parent=1 // pred_region
      %48 = dma.done [#allocation3], 3072
    $region25: #{tpu_custom_call.1} parent=1 // pred_fallthru
      _
    // Predicated region
    $region26: #{tpu_custom_call.1} parent=1 // pred_check
      _
    $region27: #{tpu_custom_call.1} parent=1 // pred_check_branch
      %50 = sbr.rel (0) target = $region29
    $region28: #{tpu_custom_call.1} parent=1 // pred_region
      %52 = dma.done [#allocation6], 4096
    $region29: #{tpu_custom_call.1} parent=1 // pred_fallthru
      _
    %v53 = vld [vmem:[%s0] sm:$0xff]
    %v54 = vld [vmem:[%s0 + $0x8] sm:$0xff]
    %v55 = vld [vmem:[%s0 + $0x18] sm:$0xff]
    %v56 = vld [vmem:[%s0 + $0x20] sm:$0xff]
    %v57 = vld [vmem:[#allocation2] sm:$0xff]
    %v58 = vld [vmem:[#allocation2 + $0x8] sm:$0xff]
    %v59 = vld [vmem:[#allocation2 + $0x10] sm:$0xff]
    %v60 = vld [vmem:[#allocation2 + $0x18] sm:$0xff]
    %v61 = vld [vmem:[#allocation2 + $0x20] sm:$0xff]
    %v62 = vld [vmem:[#allocation2 + $0x28] sm:$0xff]
    %v63 = vld [vmem:[#allocation2 + $0x30] sm:$0xff]
    %v64 = vld [vmem:[#allocation2 + $0x38] sm:$0xff]
    %v65 = vld [vmem:[%s0 + $0x1] sm:$0xff]
    %v66 = vld [vmem:[%s0 + $0x9] sm:$0xff]
    %v67 = vld [vmem:[%s0 + $0x19] sm:$0xff]
    %v68 = vld [vmem:[%s0 + $0x21] sm:$0xff]
    %s69 = scalar_lea.vmem [#allocation2], 64
    %v70 = vld [vmem:[%s69] sm:$0xff]
    %v71 = vld [vmem:[%s69 + $0x8] sm:$0xff]
    %v72 = vld [vmem:[%s69 + $0x10] sm:$0xff]
    %v73 = vld [vmem:[%s69 + $0x18] sm:$0xff]
    %v74 = vld [vmem:[%s69 + $0x20] sm:$0xff]
    %v75 = vld [vmem:[%s69 + $0x28] sm:$0xff]
    %v76 = vld [vmem:[%s69 + $0x30] sm:$0xff]
    %v77 = vld [vmem:[%s69 + $0x38] sm:$0xff]
    %vm78 = vcmask 523264
    %v80 = vsel %vm78, %v65, 0
    %v83 = vsel %vm78, %v66, 0
    %v86 = vsel %vm78, %v67, 0
    %v89 = vsel %vm78, %v68, 0
    %91 = vmatpush.msra.mxu0 0.0
    %92 = vmatpush.msra.mxu0 0.0
    %93 = vmatpush.msra.mxu0 0.0
    %94 = vmatpush.msra.mxu0 0.0
    %95 = vmatpush.msra.mxu0 0.0
    %96 = vmatpush.msra.mxu0 0.0
    %97 = vmatpush.msra.mxu0 0.0
    %98 = vmatpush.msra.mxu0 0.0
    %99 = vmatpush.msra.mxu0 %v77
    %100 = vmatpush.msra.mxu0 %v76
    %101 = vmatpush.msra.mxu0 %v75
    %102 = vmatpush.msra.mxu0 %v74
    %103 = vmatpush.msra.mxu0 %v73
    %104 = vmatpush.msra.mxu0 %v72
    %105 = vmatpush.msra.mxu0 %v71
    %106 = vmatpush.msra.mxu0 %v70
    %107 = vmatmul.f32.gmra.mxu0 %v80
    %v108 = vpop.f32.mrf.mxu0
    %v109 = vadd.f32 0.0, %v108
    %110 = vmatmul.f32.gmra.mxu0 %v83
    %v111 = vpop.f32.mrf.mxu0
    %v112 = vadd.f32 0.0, %v111
    %113 = vmatmul.f32.gmra.mxu0 %v86
    %v114 = vpop.f32.mrf.mxu0
    %v115 = vadd.f32 0.0, %v114
    %116 = vmatmul.f32.gmra.mxu0 %v89
    %v117 = vpop.f32.mrf.mxu0
    %v118 = vadd.f32 0.0, %v117
    %119 = vdwg.mxu0
    %v121 = vsel %vm78, %v53, 0
    %v124 = vsel %vm78, %v54, 0
    %v127 = vsel %vm78, %v55, 0
    %v130 = vsel %vm78, %v56, 0
    %132 = vmatpush.msra.mxu0 0.0
    %133 = vmatpush.msra.mxu0 0.0
    %134 = vmatpush.msra.mxu0 0.0
    %135 = vmatpush.msra.mxu0 0.0
    %136 = vmatpush.msra.mxu0 0.0
    %137 = vmatpush.msra.mxu0 0.0
    %138 = vmatpush.msra.mxu0 0.0
    %139 = vmatpush.msra.mxu0 0.0
    %140 = vmatpush.msra.mxu0 %v64
    %141 = vmatpush.msra.mxu0 %v63
    %142 = vmatpush.msra.mxu0 %v62
    %143 = vmatpush.msra.mxu0 %v61
    %144 = vmatpush.msra.mxu0 %v60
    %145 = vmatpush.msra.mxu0 %v59
    %146 = vmatpush.msra.mxu0 %v58
    %147 = vmatpush.msra.mxu0 %v57
    %148 = vmatmul.f32.gmra.mxu0 %v121
    %v149 = vpop.f32.mrf.mxu0
    %v150 = vadd.f32 %v109, %v149
    %151 = vmatmul.f32.gmra.mxu0 %v124
    %v152 = vpop.f32.mrf.mxu0
    %v153 = vadd.f32 %v112, %v152
    %154 = vmatmul.f32.gmra.mxu0 %v127
    %v155 = vpop.f32.mrf.mxu0
    %v156 = vadd.f32 %v115, %v155
    %157 = vmatmul.f32.gmra.mxu0 %v130
    %v158 = vpop.f32.mrf.mxu0
    %v159 = vadd.f32 %v118, %v158
    %160 = vdwg.mxu0
    %v161 = vld [vmem:[%s0 + $0x2] sm:$0xff]
    %v162 = vld [vmem:[%s0 + $0xa] sm:$0xff]
    %v163 = vld [vmem:[%s0 + $0x1a] sm:$0xff]
    %v164 = vld [vmem:[%s0 + $0x22] sm:$0xff]
    %s165 = scalar_lea.vmem [#allocation2], 128
    %v166 = vld [vmem:[%s165] sm:$0xff]
    %v167 = vld [vmem:[%s165 + $0x8] sm:$0xff]
    %v168 = vld [vmem:[%s165 + $0x10] sm:$0xff]
    %v169 = vld [vmem:[%s165 + $0x18] sm:$0xff]
    %v170 = vld [vmem:[%s165 + $0x20] sm:$0xff]
    %v171 = vld [vmem:[%s165 + $0x28] sm:$0xff]
    %v172 = vld [vmem:[%s165 + $0x30] sm:$0xff]
    %v173 = vld [vmem:[%s165 + $0x38] sm:$0xff]
    %v175 = vsel %vm78, %v161, 0
    %v178 = vsel %vm78, %v162, 0
    %v181 = vsel %vm78, %v163, 0
    %v184 = vsel %vm78, %v164, 0
    %186 = vmatpush.msra.mxu0 0.0
    %187 = vmatpush.msra.mxu0 0.0
    %188 = vmatpush.msra.mxu0 0.0
    %189 = vmatpush.msra.mxu0 0.0
    %190 = vmatpush.msra.mxu0 0.0
    %191 = vmatpush.msra.mxu0 0.0
    %192 = vmatpush.msra.mxu0 0.0
    %193 = vmatpush.msra.mxu0 0.0
    %194 = vmatpush.msra.mxu0 %v173
    %195 = vmatpush.msra.mxu0 %v172
    %196 = vmatpush.msra.mxu0 %v171
    %197 = vmatpush.msra.mxu0 %v170
    %198 = vmatpush.msra.mxu0 %v169
    %199 = vmatpush.msra.mxu0 %v168
    %200 = vmatpush.msra.mxu0 %v167
    %201 = vmatpush.msra.mxu0 %v166
    %202 = vmatmul.f32.gmra.mxu0 %v175
    %v203 = vpop.f32.mrf.mxu0
    %v204 = vadd.f32 0.0, %v203
    %205 = vmatmul.f32.gmra.mxu0 %v178
    %v206 = vpop.f32.mrf.mxu0
    %v207 = vadd.f32 0.0, %v206
    %208 = vmatmul.f32.gmra.mxu0 %v181
    %v209 = vpop.f32.mrf.mxu0
    %v210 = vadd.f32 0.0, %v209
    %211 = vmatmul.f32.gmra.mxu0 %v184
    %v212 = vpop.f32.mrf.mxu0
    %v213 = vadd.f32 0.0, %v212
    %214 = vdwg.mxu0
    %v215 = vadd.f32 %v150, %v204
    %v216 = vadd.f32 %v153, %v207
    %v217 = vadd.f32 %v156, %v210
    %v218 = vadd.f32 %v159, %v213
    %v219 = vld [vmem:[%s2] sm:$0x1]
    %v221 = vperm.slane %v219, 0
    %v223 = vadd.f32 %v215, %v221
    %v224 = vadd.f32 %v216, %v221
    %v225 = vadd.f32 %v217, %v221
    %v226 = vadd.f32 %v218, %v221
    %v227 = vld [vmem:[#allocation5] sm:$0xff]
    %v228 = vld [vmem:[#allocation5 + $0x8] sm:$0xff]
    %v229 = vld [vmem:[#allocation5 + $0x10] sm:$0xff]
    %v230 = vld [vmem:[#allocation5 + $0x18] sm:$0xff]
    %v231 = vld [vmem:[#allocation5 + $0x20] sm:$0xff]
    %v232 = vld [vmem:[#allocation5 + $0x28] sm:$0xff]
    %v233 = vld [vmem:[#allocation5 + $0x30] sm:$0xff]
    %v234 = vld [vmem:[#allocation5 + $0x38] sm:$0xff]
    %v235 = vld [vmem:[#allocation5 + $0x40] sm:$0xff]
    %v236 = vld [vmem:[#allocation5 + $0x48] sm:$0xff]
    %v237 = vld [vmem:[#allocation5 + $0x50] sm:$0xff]
    %v238 = vld [vmem:[#allocation5 + $0x58] sm:$0xff]
    %v239 = vld [vmem:[#allocation5 + $0x60] sm:$0xff]
    %v240 = vld [vmem:[#allocation5 + $0x68] sm:$0xff]
    %v241 = vld [vmem:[#allocation5 + $0x70] sm:$0xff]
    %v242 = vld [vmem:[#allocation5 + $0x78] sm:$0xff]
    %v243 = vld [vmem:[#allocation5 + $0x80] sm:$0xff]
    %v244 = vld [vmem:[#allocation5 + $0x88] sm:$0xff]
    %v245 = vld [vmem:[#allocation5 + $0x90] sm:$0xff]
    %v246 = vld [vmem:[#allocation5 + $0x98] sm:$0xff]
    %v247 = vld [vmem:[#allocation5 + $0xa0] sm:$0xff]
    %v248 = vld [vmem:[#allocation5 + $0xa8] sm:$0xff]
    %v249 = vld [vmem:[#allocation5 + $0xb0] sm:$0xff]
    %v250 = vld [vmem:[#allocation5 + $0xb8] sm:$0xff]
    %v251 = vld [vmem:[#allocation5 + $0xc0] sm:$0xff]
    %v252 = vld [vmem:[#allocation5 + $0xc8] sm:$0xff]
    %v253 = vld [vmem:[#allocation5 + $0xd0] sm:$0xff]
    %v254 = vld [vmem:[#allocation5 + $0xd8] sm:$0xff]
    %v255 = vld [vmem:[#allocation5 + $0xe0] sm:$0xff]
    %v256 = vld [vmem:[#allocation5 + $0xe8] sm:$0xff]
    %v257 = vld [vmem:[#allocation5 + $0xf0] sm:$0xff]
    %v258 = vld [vmem:[#allocation5 + $0xf8] sm:$0xff]
    %259 = vmatpush.msra.mxu0 %v257
    %260 = vmatpush.msra.mxu0 %v255
    %261 = vmatpush.msra.mxu0 %v253
    %262 = vmatpush.msra.mxu0 %v251
    %263 = vmatpush.msra.mxu0 %v249
    %264 = vmatpush.msra.mxu0 %v247
    %265 = vmatpush.msra.mxu0 %v245
    %266 = vmatpush.msra.mxu0 %v243
    %267 = vmatpush.msra.mxu0 %v241
    %268 = vmatpush.msra.mxu0 %v239
    %269 = vmatpush.msra.mxu0 %v237
    %270 = vmatpush.msra.mxu0 %v235
    %271 = vmatpush.msra.mxu0 %v233
    %272 = vmatpush.msra.mxu0 %v231
    %273 = vmatpush.msra.mxu0 %v229
    %274 = vmatpush.msra.mxu0 %v227
    %275 = vmatmul.f32.gmra.mxu0 %v223
    %v276 = vpop.f32.mrf.mxu0
    %v277 = vadd.f32 0.0, %v276
    %278 = vmatmul.f32.gmra.mxu0 %v224
    %v279 = vpop.f32.mrf.mxu0
    %v280 = vadd.f32 0.0, %v279
    %281 = vmatmul.f32.gmra.mxu0 %v225
    %v282 = vpop.f32.mrf.mxu0
    %v283 = vadd.f32 0.0, %v282
    %284 = vmatmul.f32.gmra.mxu0 %v226
    %v285 = vpop.f32.mrf.mxu0
    %v286 = vadd.f32 0.0, %v285
    %287 = vdwg.mxu0
    %288 = vmatpush.msra.mxu0 %v258
    %289 = vmatpush.msra.mxu0 %v256
    %290 = vmatpush.msra.mxu0 %v254
    %291 = vmatpush.msra.mxu0 %v252
    %292 = vmatpush.msra.mxu0 %v250
    %293 = vmatpush.msra.mxu0 %v248
    %294 = vmatpush.msra.mxu0 %v246
    %295 = vmatpush.msra.mxu0 %v244
    %296 = vmatpush.msra.mxu0 %v242
    %297 = vmatpush.msra.mxu0 %v240
    %298 = vmatpush.msra.mxu0 %v238
    %299 = vmatpush.msra.mxu0 %v236
    %300 = vmatpush.msra.mxu0 %v234
    %301 = vmatpush.msra.mxu0 %v232
    %302 = vmatpush.msra.mxu0 %v230
    %303 = vmatpush.msra.mxu0 %v228
    %304 = vmatmul.f32.gmra.mxu0 %v223
    %v305 = vpop.f32.mrf.mxu0
    %v306 = vadd.f32 0.0, %v305
    %307 = vmatmul.f32.gmra.mxu0 %v224
    %v308 = vpop.f32.mrf.mxu0
    %v309 = vadd.f32 0.0, %v308
    %310 = vmatmul.f32.gmra.mxu0 %v225
    %v311 = vpop.f32.mrf.mxu0
    %v312 = vadd.f32 0.0, %v311
    %313 = vmatmul.f32.gmra.mxu0 %v226
    %v314 = vpop.f32.mrf.mxu0
    %v315 = vadd.f32 0.0, %v314
    %316 = vdwg.mxu0
    %v317 = vld [vmem:[%s4] sm:$0xff]
    %v318 = vld [vmem:[%s4 + $0x8] sm:$0xff]
    %v319 = vld [vmem:[%s4 + $0x10] sm:$0xff]
    %v320 = vld [vmem:[%s4 + $0x18] sm:$0xff]
    %vm321 = vcmask 130048
    %v323 = vsel %vm321, %v317, 0
    %v326 = vsel %vm321, %v318, 0
    %v329 = vsel %vm321, %v319, 0
    %v332 = vsel %vm321, %v320, 0
    %334 = vmatpush.msra.mxu0 0.0
    %335 = vmatpush.msra.mxu0 0.0
    %336 = vmatpush.msra.mxu0 0.0
    %337 = vmatpush.msra.mxu0 0.0
    %338 = vmatpush.msra.mxu0 0.0
    %339 = vmatpush.msra.mxu0 0.0
    %340 = vmatpush.msra.mxu0 0.0
    %341 = vmatpush.msra.mxu0 0.0
    %342 = vmatpush.msra.mxu0 0.0
    %343 = vmatpush.msra.mxu0 0.0
    %344 = vmatpush.msra.mxu0 0.0
    %345 = vmatpush.msra.mxu0 0.0
    %346 = vmatpush.msra.mxu0 0.0
    %347 = vmatpush.msra.mxu0 0.0
    %348 = vmatpush.msra.mxu0 %v280
    %349 = vmatpush.msra.mxu0 %v277
    %350 = vmatmul.f32.gmra.mxu0 %v323
    %v351 = vpop.f32.mrf.mxu0
    %v352 = vadd.f32 0.0, %v351
    %353 = vmatmul.f32.gmra.mxu0 %v326
    %v354 = vpop.f32.mrf.mxu0
    %v355 = vadd.f32 0.0, %v354
    %356 = vmatmul.f32.gmra.mxu0 %v329
    %v357 = vpop.f32.mrf.mxu0
    %v358 = vadd.f32 0.0, %v357
    %359 = vmatmul.f32.gmra.mxu0 %v332
    %v360 = vpop.f32.mrf.mxu0
    %v361 = vadd.f32 0.0, %v360
    %362 = vdwg.mxu0
    %363 = vmatpush.msra.mxu0 0.0
    %364 = vmatpush.msra.mxu0 0.0
    %365 = vmatpush.msra.mxu0 0.0
    %366 = vmatpush.msra.mxu0 0.0
    %367 = vmatpush.msra.mxu0 0.0
    %368 = vmatpush.msra.mxu0 0.0
    %369 = vmatpush.msra.mxu0 0.0
    %370 = vmatpush.msra.mxu0 0.0
    %371 = vmatpush.msra.mxu0 0.0
    %372 = vmatpush.msra.mxu0 0.0
    %373 = vmatpush.msra.mxu0 0.0
    %374 = vmatpush.msra.mxu0 0.0
    %375 = vmatpush.msra.mxu0 0.0
    %376 = vmatpush.msra.mxu0 0.0
    %377 = vmatpush.msra.mxu0 %v309
    %378 = vmatpush.msra.mxu0 %v306
    %379 = vmatmul.f32.gmra.mxu0 %v323
    %v380 = vpop.f32.mrf.mxu0
    %v381 = vadd.f32 0.0, %v380
    %382 = vmatmul.f32.gmra.mxu0 %v326
    %v383 = vpop.f32.mrf.mxu0
    %v384 = vadd.f32 0.0, %v383
    %385 = vmatmul.f32.gmra.mxu0 %v329
    %v386 = vpop.f32.mrf.mxu0
    %v387 = vadd.f32 0.0, %v386
    %388 = vmatmul.f32.gmra.mxu0 %v332
    %v389 = vpop.f32.mrf.mxu0
    %v390 = vadd.f32 0.0, %v389
    %391 = vdwg.mxu0
    %v392 = vxor.u32 %v352, 2147483648
    %v393 = vxor.u32 %v381, 2147483648
    %v394 = vxor.u32 %v355, 2147483648
    %v395 = vxor.u32 %v384, 2147483648
    %v396 = vxor.u32 %v358, 2147483648
    %v397 = vxor.u32 %v387, 2147483648
    %v398 = vxor.u32 %v361, 2147483648
    %v399 = vxor.u32 %v390, 2147483648
    %v400 = vmul.f32 %v392, 1.442695
    %v401 = vpow.pop %v400
    %v402 = vmul.f32 %v393, 1.442695
    %v403 = vpow.pop %v402
    %v404 = vmul.f32 %v394, 1.442695
    %v405 = vpow.pop %v404
    %v406 = vmul.f32 %v395, 1.442695
    %v407 = vpow.pop %v406
    %v408 = vmul.f32 %v396, 1.442695
    %v409 = vpow.pop %v408
    %v410 = vmul.f32 %v397, 1.442695
    %v411 = vpow.pop %v410
    %v412 = vmul.f32 %v398, 1.442695
    %v413 = vpow.pop %v412
    %v414 = vmul.f32 %v399, 1.442695
    %v415 = vpow.pop %v414
    %v416 = vadd.f32 %v401, 1.0
    %v417 = vadd.f32 %v403, 1.0
    %v418 = vadd.f32 %v405, 1.0
    %v419 = vadd.f32 %v407, 1.0
    %v420 = vadd.f32 %v409, 1.0
    %v421 = vadd.f32 %v411, 1.0
    %v422 = vadd.f32 %v413, 1.0
    %v423 = vadd.f32 %v415, 1.0
    %v424 = vrcp.pop %v416
    %v425 = vmul.f32 %v416, %v424
    %v426 = vsub.f32 1.0, %v425
    %v427 = vmul.f32 %v424, %v426
    %v428 = vadd.f32 %v424, %v427
    %vm429 = vweird.f32 %v416
    %vm430 = vweird.f32 %v424
    %vm431 = vmor %vm429, %vm430
    %v432 = vsel %vm431, %v424, %v428
    %v433 = vand.u32 2147483647, %v416
    %vm434 = vcmp.eq.f32.partialorder %v433, 8.507059e+37
    %v435 = vand.u32 %v416, 2147483648
    %v436 = vor.u32 1.1754944e-38, %v435
    %v437 = vsel %vm434, %v436, %v432
    %v438 = vmul.f32 1.0, %v437
    %v439 = vrcp.pop %v417
    %v440 = vmul.f32 %v417, %v439
    %v441 = vsub.f32 1.0, %v440
    %v442 = vmul.f32 %v439, %v441
    %v443 = vadd.f32 %v439, %v442
    %vm444 = vweird.f32 %v417
    %vm445 = vweird.f32 %v439
    %vm446 = vmor %vm444, %vm445
    %v447 = vsel %vm446, %v439, %v443
    %v448 = vand.u32 2147483647, %v417
    %vm449 = vcmp.eq.f32.partialorder %v448, 8.507059e+37
    %v450 = vand.u32 %v417, 2147483648
    %v451 = vor.u32 1.1754944e-38, %v450
    %v452 = vsel %vm449, %v451, %v447
    %v453 = vmul.f32 1.0, %v452
    %v454 = vrcp.pop %v418
    %v455 = vmul.f32 %v418, %v454
    %v456 = vsub.f32 1.0, %v455
    %v457 = vmul.f32 %v454, %v456
    %v458 = vadd.f32 %v454, %v457
    %vm459 = vweird.f32 %v418
    %vm460 = vweird.f32 %v454
    %vm461 = vmor %vm459, %vm460
    %v462 = vsel %vm461, %v454, %v458
    %v463 = vand.u32 2147483647, %v418
    %vm464 = vcmp.eq.f32.partialorder %v463, 8.507059e+37
    %v465 = vand.u32 %v418, 2147483648
    %v466 = vor.u32 1.1754944e-38, %v465
    %v467 = vsel %vm464, %v466, %v462
    %v468 = vmul.f32 1.0, %v467
    %v469 = vrcp.pop %v419
    %v470 = vmul.f32 %v419, %v469
    %v471 = vsub.f32 1.0, %v470
    %v472 = vmul.f32 %v469, %v471
    %v473 = vadd.f32 %v469, %v472
    %vm474 = vweird.f32 %v419
    %vm475 = vweird.f32 %v469
    %vm476 = vmor %vm474, %vm475
    %v477 = vsel %vm476, %v469, %v473
    %v478 = vand.u32 2147483647, %v419
    %vm479 = vcmp.eq.f32.partialorder %v478, 8.507059e+37
    %v480 = vand.u32 %v419, 2147483648
    %v481 = vor.u32 1.1754944e-38, %v480
    %v482 = vsel %vm479, %v481, %v477
    %v483 = vmul.f32 1.0, %v482
    %v484 = vrcp.pop %v420
    %v485 = vmul.f32 %v420, %v484
    %v486 = vsub.f32 1.0, %v485
    %v487 = vmul.f32 %v484, %v486
    %v488 = vadd.f32 %v484, %v487
    %vm489 = vweird.f32 %v420
    %vm490 = vweird.f32 %v484
    %vm491 = vmor %vm489, %vm490
    %v492 = vsel %vm491, %v484, %v488
    %v493 = vand.u32 2147483647, %v420
    %vm494 = vcmp.eq.f32.partialorder %v493, 8.507059e+37
    %v495 = vand.u32 %v420, 2147483648
    %v496 = vor.u32 1.1754944e-38, %v495
    %v497 = vsel %vm494, %v496, %v492
    %v498 = vmul.f32 1.0, %v497
    %v499 = vrcp.pop %v421
    %v500 = vmul.f32 %v421, %v499
    %v501 = vsub.f32 1.0, %v500
    %v502 = vmul.f32 %v499, %v501
    %v503 = vadd.f32 %v499, %v502
    %vm504 = vweird.f32 %v421
    %vm505 = vweird.f32 %v499
    %vm506 = vmor %vm504, %vm505
    %v507 = vsel %vm506, %v499, %v503
    %v508 = vand.u32 2147483647, %v421
    %vm509 = vcmp.eq.f32.partialorder %v508, 8.507059e+37
    %v510 = vand.u32 %v421, 2147483648
    %v511 = vor.u32 1.1754944e-38, %v510
    %v512 = vsel %vm509, %v511, %v507
    %v513 = vmul.f32 1.0, %v512
    %v514 = vrcp.pop %v422
    %v515 = vmul.f32 %v422, %v514
    %v516 = vsub.f32 1.0, %v515
    %v517 = vmul.f32 %v514, %v516
    %v518 = vadd.f32 %v514, %v517
    %vm519 = vweird.f32 %v422
    %vm520 = vweird.f32 %v514
    %vm521 = vmor %vm519, %vm520
    %v522 = vsel %vm521, %v514, %v518
    %v523 = vand.u32 2147483647, %v422
    %vm524 = vcmp.eq.f32.partialorder %v523, 8.507059e+37
    %v525 = vand.u32 %v422, 2147483648
    %v526 = vor.u32 1.1754944e-38, %v525
    %v527 = vsel %vm524, %v526, %v522
    %v528 = vmul.f32 1.0, %v527
    %v529 = vrcp.pop %v423
    %v530 = vmul.f32 %v423, %v529
    %v531 = vsub.f32 1.0, %v530
    %v532 = vmul.f32 %v529, %v531
    %v533 = vadd.f32 %v529, %v532
    %vm534 = vweird.f32 %v423
    %vm535 = vweird.f32 %v529
    %vm536 = vmor %vm534, %vm535
    %v537 = vsel %vm536, %v529, %v533
    %v538 = vand.u32 2147483647, %v423
    %vm539 = vcmp.eq.f32.partialorder %v538, 8.507059e+37
    %v540 = vand.u32 %v423, 2147483648
    %v541 = vor.u32 1.1754944e-38, %v540
    %v542 = vsel %vm539, %v541, %v537
    %v543 = vmul.f32 1.0, %v542
    %544 = vst [vmem:[#allocation7] sm:$0xff] %v438
    %545 = vst [vmem:[#allocation7 + $0x8] sm:$0xff] %v453
    %546 = vst [vmem:[#allocation7 + $0x10] sm:$0xff] %v468
    %547 = vst [vmem:[#allocation7 + $0x18] sm:$0xff] %v483
    %548 = vst [vmem:[#allocation7 + $0x20] sm:$0xff] %v498
    %549 = vst [vmem:[#allocation7 + $0x28] sm:$0xff] %v513
    %550 = vst [vmem:[#allocation7 + $0x30] sm:$0xff] %v528
    %551 = vst [vmem:[#allocation7 + $0x38] sm:$0xff] %v543
    %552 = vmatpush.msra.mxu0 0.0
    %553 = vmatpush.msra.mxu0 0.0
    %554 = vmatpush.msra.mxu0 0.0
    %555 = vmatpush.msra.mxu0 0.0
    %556 = vmatpush.msra.mxu0 0.0
    %557 = vmatpush.msra.mxu0 0.0
    %558 = vmatpush.msra.mxu0 0.0
    %559 = vmatpush.msra.mxu0 0.0
    %560 = vmatpush.msra.mxu0 0.0
    %561 = vmatpush.msra.mxu0 0.0
    %562 = vmatpush.msra.mxu0 0.0
    %563 = vmatpush.msra.mxu0 0.0
    %564 = vmatpush.msra.mxu0 0.0
    %565 = vmatpush.msra.mxu0 0.0
    %566 = vmatpush.msra.mxu0 %v286
    %567 = vmatpush.msra.mxu0 %v283
    %568 = vmatmul.f32.gmra.mxu0 %v323
    %v569 = vpop.f32.mrf.mxu0
    %v570 = vadd.f32 0.0, %v569
    %571 = vmatmul.f32.gmra.mxu0 %v326
    %v572 = vpop.f32.mrf.mxu0
    %v573 = vadd.f32 0.0, %v572
    %574 = vmatmul.f32.gmra.mxu0 %v329
    %v575 = vpop.f32.mrf.mxu0
    %v576 = vadd.f32 0.0, %v575
    %577 = vmatmul.f32.gmra.mxu0 %v332
    %v578 = vpop.f32.mrf.mxu0
    %v579 = vadd.f32 0.0, %v578
    %580 = vdwg.mxu0
    %581 = vmatpush.msra.mxu0 0.0
    %582 = vmatpush.msra.mxu0 0.0
    %583 = vmatpush.msra.mxu0 0.0
    %584 = vmatpush.msra.mxu0 0.0
    %585 = vmatpush.msra.mxu0 0.0
    %586 = vmatpush.msra.mxu0 0.0
    %587 = vmatpush.msra.mxu0 0.0
    %588 = vmatpush.msra.mxu0 0.0
    %589 = vmatpush.msra.mxu0 0.0
    %590 = vmatpush.msra.mxu0 0.0
    %591 = vmatpush.msra.mxu0 0.0
    %592 = vmatpush.msra.mxu0 0.0
    %593 = vmatpush.msra.mxu0 0.0
    %594 = vmatpush.msra.mxu0 0.0
    %595 = vmatpush.msra.mxu0 %v315
    %596 = vmatpush.msra.mxu0 %v312
    %597 = vmatmul.f32.gmra.mxu0 %v323
    %v598 = vpop.f32.mrf.mxu0
    %v599 = vadd.f32 0.0, %v598
    %600 = vmatmul.f32.gmra.mxu0 %v326
    %v601 = vpop.f32.mrf.mxu0
    %v602 = vadd.f32 0.0, %v601
    %603 = vmatmul.f32.gmra.mxu0 %v329
    %v604 = vpop.f32.mrf.mxu0
    %v605 = vadd.f32 0.0, %v604
    %606 = vmatmul.f32.gmra.mxu0 %v332
    %v607 = vpop.f32.mrf.mxu0
    %v608 = vadd.f32 0.0, %v607
    %609 = vdwg.mxu0
    %v610 = vxor.u32 %v570, 2147483648
    %v611 = vxor.u32 %v599, 2147483648
    %v612 = vxor.u32 %v573, 2147483648
    %v613 = vxor.u32 %v602, 2147483648
    %v614 = vxor.u32 %v576, 2147483648
    %v615 = vxor.u32 %v605, 2147483648
    %v616 = vxor.u32 %v579, 2147483648
    %v617 = vxor.u32 %v608, 2147483648
    %v618 = vmul.f32 %v610, 1.442695
    %v619 = vpow.pop %v618
    %v620 = vmul.f32 %v611, 1.442695
    %v621 = vpow.pop %v620
    %v622 = vmul.f32 %v612, 1.442695
    %v623 = vpow.pop %v622
    %v624 = vmul.f32 %v613, 1.442695
    %v625 = vpow.pop %v624
    %v626 = vmul.f32 %v614, 1.442695
    %v627 = vpow.pop %v626
    %v628 = vmul.f32 %v615, 1.442695
    %v629 = vpow.pop %v628
    %v630 = vmul.f32 %v616, 1.442695
    %v631 = vpow.pop %v630
    %v632 = vmul.f32 %v617, 1.442695
    %v633 = vpow.pop %v632
    %v634 = vadd.f32 %v619, 1.0
    %v635 = vadd.f32 %v621, 1.0
    %v636 = vadd.f32 %v623, 1.0
    %v637 = vadd.f32 %v625, 1.0
    %v638 = vadd.f32 %v627, 1.0
    %v639 = vadd.f32 %v629, 1.0
    %v640 = vadd.f32 %v631, 1.0
    %v641 = vadd.f32 %v633, 1.0
    %v642 = vrcp.pop %v634
    %v643 = vmul.f32 %v634, %v642
    %v644 = vsub.f32 1.0, %v643
    %v645 = vmul.f32 %v642, %v644
    %v646 = vadd.f32 %v642, %v645
    %vm647 = vweird.f32 %v634
    %vm648 = vweird.f32 %v642
    %vm649 = vmor %vm647, %vm648
    %v650 = vsel %vm649, %v642, %v646
    %v651 = vand.u32 2147483647, %v634
    %vm652 = vcmp.eq.f32.partialorder %v651, 8.507059e+37
    %v653 = vand.u32 %v634, 2147483648
    %v654 = vor.u32 1.1754944e-38, %v653
    %v655 = vsel %vm652, %v654, %v650
    %v656 = vmul.f32 1.0, %v655
    %v657 = vrcp.pop %v635
    %v658 = vmul.f32 %v635, %v657
    %v659 = vsub.f32 1.0, %v658
    %v660 = vmul.f32 %v657, %v659
    %v661 = vadd.f32 %v657, %v660
    %vm662 = vweird.f32 %v635
    %vm663 = vweird.f32 %v657
    %vm664 = vmor %vm662, %vm663
    %v665 = vsel %vm664, %v657, %v661
    %v666 = vand.u32 2147483647, %v635
    %vm667 = vcmp.eq.f32.partialorder %v666, 8.507059e+37
    %v668 = vand.u32 %v635, 2147483648
    %v669 = vor.u32 1.1754944e-38, %v668
    %v670 = vsel %vm667, %v669, %v665
    %v671 = vmul.f32 1.0, %v670
    %v672 = vrcp.pop %v636
    %v673 = vmul.f32 %v636, %v672
    %v674 = vsub.f32 1.0, %v673
    %v675 = vmul.f32 %v672, %v674
    %v676 = vadd.f32 %v672, %v675
    %vm677 = vweird.f32 %v636
    %vm678 = vweird.f32 %v672
    %vm679 = vmor %vm677, %vm678
    %v680 = vsel %vm679, %v672, %v676
    %v681 = vand.u32 2147483647, %v636
    %vm682 = vcmp.eq.f32.partialorder %v681, 8.507059e+37
    %v683 = vand.u32 %v636, 2147483648
    %v684 = vor.u32 1.1754944e-38, %v683
    %v685 = vsel %vm682, %v684, %v680
    %v686 = vmul.f32 1.0, %v685
    %v687 = vrcp.pop %v637
    %v688 = vmul.f32 %v637, %v687
    %v689 = vsub.f32 1.0, %v688
    %v690 = vmul.f32 %v687, %v689
    %v691 = vadd.f32 %v687, %v690
    %vm692 = vweird.f32 %v637
    %vm693 = vweird.f32 %v687
    %vm694 = vmor %vm692, %vm693
    %v695 = vsel %vm694, %v687, %v691
    %v696 = vand.u32 2147483647, %v637
    %vm697 = vcmp.eq.f32.partialorder %v696, 8.507059e+37
    %v698 = vand.u32 %v637, 2147483648
    %v699 = vor.u32 1.1754944e-38, %v698
    %v700 = vsel %vm697, %v699, %v695
    %v701 = vmul.f32 1.0, %v700
    %v702 = vrcp.pop %v638
    %v703 = vmul.f32 %v638, %v702
    %v704 = vsub.f32 1.0, %v703
    %v705 = vmul.f32 %v702, %v704
    %v706 = vadd.f32 %v702, %v705
    %vm707 = vweird.f32 %v638
    %vm708 = vweird.f32 %v702
    %vm709 = vmor %vm707, %vm708
    %v710 = vsel %vm709, %v702, %v706
    %v711 = vand.u32 2147483647, %v638
    %vm712 = vcmp.eq.f32.partialorder %v711, 8.507059e+37
    %v713 = vand.u32 %v638, 2147483648
    %v714 = vor.u32 1.1754944e-38, %v713
    %v715 = vsel %vm712, %v714, %v710
    %v716 = vmul.f32 1.0, %v715
    %v717 = vrcp.pop %v639
    %v718 = vmul.f32 %v639, %v717
    %v719 = vsub.f32 1.0, %v718
    %v720 = vmul.f32 %v717, %v719
    %v721 = vadd.f32 %v717, %v720
    %vm722 = vweird.f32 %v639
    %vm723 = vweird.f32 %v717
    %vm724 = vmor %vm722, %vm723
    %v725 = vsel %vm724, %v717, %v721
    %v726 = vand.u32 2147483647, %v639
    %vm727 = vcmp.eq.f32.partialorder %v726, 8.507059e+37
    %v728 = vand.u32 %v639, 2147483648
    %v729 = vor.u32 1.1754944e-38, %v728
    %v730 = vsel %vm727, %v729, %v725
    %v731 = vmul.f32 1.0, %v730
    %v732 = vrcp.pop %v640
    %v733 = vmul.f32 %v640, %v732
    %v734 = vsub.f32 1.0, %v733
    %v735 = vmul.f32 %v732, %v734
    %v736 = vadd.f32 %v732, %v735
    %vm737 = vweird.f32 %v640
    %vm738 = vweird.f32 %v732
    %vm739 = vmor %vm737, %vm738
    %v740 = vsel %vm739, %v732, %v736
    %v741 = vand.u32 2147483647, %v640
    %vm742 = vcmp.eq.f32.partialorder %v741, 8.507059e+37
    %v743 = vand.u32 %v640, 2147483648
    %v744 = vor.u32 1.1754944e-38, %v743
    %v745 = vsel %vm742, %v744, %v740
    %v746 = vmul.f32 1.0, %v745
    %v747 = vrcp.pop %v641
    %v748 = vmul.f32 %v641, %v747
    %v749 = vsub.f32 1.0, %v748
    %v750 = vmul.f32 %v747, %v749
    %v751 = vadd.f32 %v747, %v750
    %vm752 = vweird.f32 %v641
    %vm753 = vweird.f32 %v747
    %vm754 = vmor %vm752, %vm753
    %v755 = vsel %vm754, %v747, %v751
    %v756 = vand.u32 2147483647, %v641
    %vm757 = vcmp.eq.f32.partialorder %v756, 8.507059e+37
    %v758 = vand.u32 %v641, 2147483648
    %v759 = vor.u32 1.1754944e-38, %v758
    %v760 = vsel %vm757, %v759, %v755
    %v761 = vmul.f32 1.0, %v760
    %s762 = scalar_lea.vmem [#allocation7], 64
    %763 = vst [vmem:[%s762] sm:$0xff] %v656
    %764 = vst [vmem:[%s762 + $0x8] sm:$0xff] %v671
    %765 = vst [vmem:[%s762 + $0x10] sm:$0xff] %v686
    %766 = vst [vmem:[%s762 + $0x18] sm:$0xff] %v701
    %767 = vst [vmem:[%s762 + $0x20] sm:$0xff] %v716
    %768 = vst [vmem:[%s762 + $0x28] sm:$0xff] %v731
    %769 = vst [vmem:[%s762 + $0x30] sm:$0xff] %v746
    %770 = vst [vmem:[%s762 + $0x38] sm:$0xff] %v761
    // Predicated region
    $region30: #{tpu_custom_call.1} parent=1 // pred_check
      _
    $region31: #{tpu_custom_call.1} parent=1 // pred_check_branch
      %772 = sbr.rel (0) target = $region33
    $region32: #{tpu_custom_call.1} parent=1 // pred_region
      %774 = vsyncadd [#allocation4], 0
      %s775 = sshll.u32 [#allocation7], 4
      %s776 = int_to_ptr.vmem [resolvable:$true] %s775
      %s777 = sshll.u32 %s5, 4
      %s778 = int_to_ptr.hbm [resolvable:$true] %s777
      %783 = dma.vmem_to_hbm [thread:$0]  %s776, 2048, %s778, [#allocation4], 256, 256, 16
    $region33: #{tpu_custom_call.1} parent=1 // pred_fallthru
      _
    // Predicated region
    $region34: #{tpu_custom_call.1} parent=1 // pred_check
      _
    $region35: #{tpu_custom_call.1} parent=1 // pred_check_branch
      %785 = sbr.rel (0) target = $region37
    $region36: #{tpu_custom_call.1} parent=1 // pred_region
      %787 = dma.done [#allocation4], 2048
    $region37: #{tpu_custom_call.1} parent=1 // pred_fallthru
      _
    %788 = vsyncpa [#allocation3], 1
    %789 = vsyncpa [#allocation6], 1
    %790 = vsyncpa [#allocation4], 1

</llo_original>
